<compile_context>
chip_gen: v5e
topology: v5e:2x2
jax: 0.10.0
libtpu: 0.0.40
codegen_flags: <defaults>
</compile_context>

<pallas_src>
import functools

import jax
import jax.numpy as jnp
from jax import lax
from jax.experimental import pallas as pl
from jax.experimental.pallas import tpu as pltpu

FOLD = 4  # batch sub-chunks folded along the sublane axis


def _netr_w_kernel(x_ref,
                   w1_ref, b1_ref,
                   w2_ref, b2_ref,
                   w3_ref, b3_ref,
                   wf_ref, bf_ref,
                   out_ref,
                   h_ref,
                   *, hidden, tile_b, ragged, batch):
    """Fused MLP.  x tile is (tile_b, nz) natural layout; activations are
    kept folded as (FOLD*hidden, tile_b//FOLD) so the MXU sees K=M=128."""
    cdt = w1_ref.dtype
    tb4 = tile_b // FOLD

    def lrelu(v):
        return jnp.where(v > 0, v, 0.2 * v)

    w1 = w1_ref[...]                                   # (hidden, nz) compute dtype
    b1 = b1_ref[...]                                   # (hidden, 1) f32

    if ragged:
        valid = batch - pl.program_id(0) * tile_b      # rows valid in this tile
        row_ids = lax.broadcasted_iota(jnp.int32, (tb4, 1), 0)

    # ---- layer 1: 4 batch sub-chunks -> folded (FOLD*hidden, tb4) scratch ----
    for j in range(FOLD):
        xc = x_ref[j * tb4:(j + 1) * tb4, :]           # (tb4, nz), input dtype
        if ragged:
            # Zero out-of-range rows of the ragged last tile so no Inf/NaN
            # garbage can leak through the block-diagonal zeros (0*Inf=NaN).
            xc = jnp.where(row_ids < (valid - j * tb4), xc, jnp.zeros_like(xc))
        hj = lax.dot_general(w1, xc.astype(cdt),
                             (((1,), (1,)), ((), ())),  # contract on nz (x "transposed" on MXU)
                             preferred_element_type=jnp.float32)
        h_ref[j * hidden:(j + 1) * hidden, :] = lrelu(hj + b1).astype(cdt)

    # ---- layers 2..3: block-diagonal 128-wide matmuls on the folded tile ----
    h = jnp.dot(w2_ref[...], h_ref[...], preferred_element_type=jnp.float32)
    h = lrelu(h + b2_ref[...]).astype(cdt)
    h = jnp.dot(w3_ref[...], h, preferred_element_type=jnp.float32)
    h = lrelu(h + b3_ref[...]).astype(cdt)

    # ---- fused (Linear4 -> predictor): (FOLD, 4h) @ (4h, tb4) -> (FOLD, tb4)
    out = jnp.dot(wf_ref[...], h, preferred_element_type=jnp.float32) + bf_ref[...]
    out_ref[...] = out[None].astype(out_ref.dtype)


def netr_w_forward(x, params, *, tile_b=16384, compute_dtype=jnp.bfloat16):
    """x: (B, nz) float32.  Returns (B,) float32 (matches .squeeze(1))."""
    (w1, b1, w2, b2, w3, b3, w4, b4, wp, bp) = params
    B, nz = x.shape
    hidden = w1.shape[0]

    # ---- algebraic fusion of Linear4 + predictor (exact, no activation) -----
    wf = wp @ w4                                       # (1, hidden)
    bf = wp @ b4 + bp                                  # (1, 1)

    # ---- 4x block-diagonal weight packing (wrapper-side, tiny matrices) -----
    eye4 = jnp.eye(FOLD, dtype=w1.dtype)
    w1c = w1.astype(compute_dtype)                     # (h, nz)
    w2c = jnp.kron(eye4, w2).astype(compute_dtype)     # (4h, 4h)
    w3c = jnp.kron(eye4, w3).astype(compute_dtype)     # (4h, 4h)
    wfc = jnp.kron(eye4, wf).astype(compute_dtype)     # (FOLD, 4h)
    b2t = jnp.tile(b2, (FOLD, 1))                      # (4h, 1) f32
    b3t = jnp.tile(b3, (FOLD, 1))                      # (4h, 1) f32

    # ---- batch tiling --------------------------------------------------------
    def rup(a, m):
        return ((a + m - 1) // m) * m

    B_al = rup(B, 8)                                   # sublane alignment (also /FOLD)
    if B_al != B:                                      # rare path only
        x = jnp.pad(x, ((0, B_al - B), (0, 0)))

    tile_b = max(8, rup(int(tile_b), 8))
    tile_b = min(tile_b, B_al)
    # Prefer >=2 grid steps so both v7x TensorCores get work ("parallel" axis).
    if B_al >= 1024 and pl.cdiv(B_al, tile_b) < 2:
        tile_b = min(B_al, rup(pl.cdiv(B_al, 2), 512))
    n_tiles = pl.cdiv(B_al, tile_b)
    tb4 = tile_b // FOLD
    ragged = (B_al % tile_b) != 0

    kernel = functools.partial(_netr_w_kernel, hidden=hidden, tile_b=tile_b,
                               ragged=ragged, batch=B_al)

    def resident(a):
        # Full block + constant index_map -> stays resident in VMEM across steps.
        return pl.BlockSpec(a.shape, lambda i: (0, 0))

    in_specs = [
        pl.BlockSpec((tile_b, nz), lambda i: (i, 0)),  # streamed x tile, natural layout
        resident(w1c), resident(b1),
        resident(w2c), resident(b2t),
        resident(w3c), resident(b3t),
        resident(wfc), resident(bf),
    ]
    out_specs = pl.BlockSpec((1, FOLD, tb4), lambda i: (i, 0, 0))

    weights_bytes = sum(int(a.size) * a.dtype.itemsize
                        for a in (w1c, b1, w2c, b2t, w3c, b3t, wfc, bf))
    x_tile_bytes = tile_b * nz * x.dtype.itemsize
    fold_f32_bytes = FOLD * hidden * tb4 * 4
    vmem_limit = int(2 * x_tile_bytes + 2 * weights_bytes
                     + 8 * fold_f32_bytes + (1 << 20))
    vmem_limit = min(max(vmem_limit, 4 << 20), 56 << 20)

    flops = int(n_tiles * tile_b) * (2 * hidden * nz
                                     + 4 * FOLD * hidden * hidden
                                     + 2 * FOLD * hidden)
    bytes_accessed = int(B_al * nz * x.dtype.itemsize
                         + n_tiles * tile_b * 4 + weights_bytes)
    cost = pl.CostEstimate(flops=flops, transcendentals=0,
                           bytes_accessed=bytes_accessed)

    out = pl.pallas_call(
        kernel,
        out_shape=jax.ShapeDtypeStruct((n_tiles, FOLD, tb4), jnp.float32),
        grid_spec=pltpu.PrefetchScalarGridSpec(
            num_scalar_prefetch=0,
            grid=(n_tiles,),
            in_specs=in_specs,
            out_specs=out_specs,
            scratch_shapes=[pltpu.VMEM((FOLD * hidden, tb4), compute_dtype)],
        ),
        compiler_params=pltpu.CompilerParams(
            dimension_semantics=("parallel",),
            vmem_limit_bytes=vmem_limit),
        cost_estimate=cost,
    )(x, w1c, b1, w2c, b2t, w3c, b3t, wfc, bf)

    # Un-fold: out[i, j, l] is batch element i*tile_b + j*tb4 + l.
    return out.reshape(-1)[:B]


def _init_linear(key, in_dim, out_dim):
    """Torch-style init; W stored as (out, in), b as (out, 1)."""
    k = 1.0 / jnp.sqrt(jnp.float32(in_dim))
    kw, kb = jax.random.split(key)
    w = jax.random.uniform(kw, (out_dim, in_dim), jnp.float32, -k, k)
    b = jax.random.uniform(kb, (out_dim, 1), jnp.float32, -k, k)
    return w, b


def make_params(key, nz, ndf, regressor_out_dims):
    h = ndf * 4
    keys = jax.random.split(key, 5)
    w1, b1 = _init_linear(keys[0], nz, h)
    w2, b2 = _init_linear(keys[1], h, h)
    w3, b3 = _init_linear(keys[2], h, h)
    w4, b4 = _init_linear(keys[3], h, regressor_out_dims)
    wp, bp = _init_linear(keys[4], regressor_out_dims, 1)
    return (w1, b1, w2, b2, w3, b3, w4, b4, wp, bp)


def reference_forward(x, params):
    """Pure-JAX reference (standard row-major math, unfused)."""
    (w1, b1, w2, b2, w3, b3, w4, b4, wp, bp) = params
    lrelu = lambda v: jnp.where(v > 0, v, 0.2 * v)
    h = lrelu(x @ w1.T + b1[:, 0])
    h = lrelu(h @ w2.T + b2[:, 0])
    h = lrelu(h @ w3.T + b3[:, 0])
    h = h @ w4.T + b4[:, 0]
    h = h.reshape(h.shape[0], -1)
    return (h @ wp.T + bp[:, 0])[:, 0]


if __name__ == "__main__":
    # Module-consistent small shapes: opt.nz=32, opt.ndf=8 (hidden 32),
    # opt.regressor_out_dims=16; batch=256.
    nz, ndf, regressor_out_dims, batch = 32, 8, 16, 256

    key = jax.random.PRNGKey(0)
    k_x, k_p = jax.random.split(key)
    x = jax.random.normal(k_x, (batch, nz), jnp.float32)
    params = make_params(k_p, nz, ndf, regressor_out_dims)

    ref = reference_forward(x, params)

    # f32 MXU-operand path (strict check); tile clamps to the full batch.
    pred = jax.block_until_ready(
        netr_w_forward(x, params, compute_dtype=jnp.float32))
    assert pred.shape == (batch,)
    assert jnp.allclose(pred, ref, atol=1e-4, rtol=1e-4), "f32 mismatch vs reference"

    # Multi-tile grid (4 steps of 64) exercising the batch pipeline.
    pred_mt = jax.block_until_ready(
        netr_w_forward(x, params, tile_b=64, compute_dtype=jnp.float32))
    assert jnp.allclose(pred_mt, ref, atol=1e-4, rtol=1e-4), "multi-tile mismatch"

    # Ragged last tile (200 = 128 + 72) exercising the in-kernel batch mask.
    pred_rg = jax.block_until_ready(
        netr_w_forward(x[:200], params, tile_b=128, compute_dtype=jnp.float32))
    assert jnp.allclose(pred_rg, ref[:200], atol=1e-4, rtol=1e-4), "ragged mismatch"

    # Tiny batch not divisible by 8 (rare wrapper zero-pad path).
    pred_s = jax.block_until_ready(
        netr_w_forward(x[:6], params, compute_dtype=jnp.float32))
    assert jnp.allclose(pred_s, ref[:6], atol=1e-4, rtol=1e-4), "small-batch mismatch"

    # Default bf16 MXU-operand path (recommended on v6e/v7x) — loose tolerance.
    pred_bf16 = jax.block_until_ready(netr_w_forward(x, params))
    max_err = jnp.max(jnp.abs(pred_bf16 - ref))
    assert max_err < 5e-2 * (1.0 + jnp.max(jnp.abs(ref))), "bf16 mismatch vs reference"

    print("KERNEL_OK")
</pallas_src>

<mosaic_0001>
module attributes {stable_mosaic.version = 11 : i64} {
  func.func @_netr_w_kernel(%arg0: i32, %arg1: memref<256x32xf32, #tpu.memory_space<vmem>>, %arg2: memref<32x32xf32, #tpu.memory_space<vmem>>, %arg3: memref<32x1xf32, #tpu.memory_space<vmem>>, %arg4: memref<128x128xf32, #tpu.memory_space<vmem>>, %arg5: memref<128x1xf32, #tpu.memory_space<vmem>>, %arg6: memref<128x128xf32, #tpu.memory_space<vmem>>, %arg7: memref<128x1xf32, #tpu.memory_space<vmem>>, %arg8: memref<4x128xf32, #tpu.memory_space<vmem>>, %arg9: memref<1x1xf32, #tpu.memory_space<vmem>>, %arg10: memref<1x4x64xf32, #tpu.memory_space<vmem>>, %arg11: memref<128x64xf32, #tpu.memory_space<vmem>>) attributes {dimension_semantics = [#tpu.dimension_semantics<parallel>], iteration_bounds = array<i64: 1>, scalar_prefetch = 0 : i64, scratch_operands = 1 : i64, tpu.core_type = #tpu.core_type<tc>, window_params = [{transform_indices = @transform_0, window_bounds = array<i64: 256, 32>}, {pipeline_mode = #tpu.pipeline_mode<synchronous>, transform_indices = @transform_1, window_bounds = array<i64: 32, 32>}, {pipeline_mode = #tpu.pipeline_mode<synchronous>, transform_indices = @transform_2, window_bounds = array<i64: 32, 1>}, {pipeline_mode = #tpu.pipeline_mode<synchronous>, transform_indices = @transform_3, window_bounds = array<i64: 128, 128>}, {pipeline_mode = #tpu.pipeline_mode<synchronous>, transform_indices = @transform_4, window_bounds = array<i64: 128, 1>}, {pipeline_mode = #tpu.pipeline_mode<synchronous>, transform_indices = @transform_5, window_bounds = array<i64: 128, 128>}, {pipeline_mode = #tpu.pipeline_mode<synchronous>, transform_indices = @transform_6, window_bounds = array<i64: 128, 1>}, {pipeline_mode = #tpu.pipeline_mode<synchronous>, transform_indices = @transform_7, window_bounds = array<i64: 4, 128>}, {pipeline_mode = #tpu.pipeline_mode<synchronous>, transform_indices = @transform_8, window_bounds = array<i64: 1, 1>}, {transform_indices = @transform_9, window_bounds = array<i64: 1, 4, 64>}]} {
    %c0 = arith.constant 0 : index
    %c0_0 = arith.constant 0 : index
    %0 = vector.load %arg2[%c0, %c0_0] : memref<32x32xf32, #tpu.memory_space<vmem>>, vector<32x32xf32>
    %c0_1 = arith.constant 0 : index
    %c0_2 = arith.constant 0 : index
    %1 = vector.load %arg3[%c0_1, %c0_2] : memref<32x1xf32, #tpu.memory_space<vmem>>, vector<32x1xf32>
    %c0_3 = arith.constant 0 : index
    %c0_4 = arith.constant 0 : index
    %2 = vector.load %arg1[%c0_3, %c0_4] : memref<256x32xf32, #tpu.memory_space<vmem>>, vector<64x32xf32>
    %cst = arith.constant dense<0.000000e+00> : vector<32x64xf32>
    %3 = tpu.matmul %0, %2, %cst {dimension_numbers = #tpu.dot_dimension_numbers<[1], [1], [0], [0], [0, 0, 1, 0], [], []>} : vector<32x32xf32>, vector<64x32xf32>, vector<32x64xf32> -> vector<32x64xf32>
    %4 = vector.broadcast %1 : vector<32x1xf32> to vector<32x64xf32>
    %5 = arith.addf %3, %4 : vector<32x64xf32>
    %cst_5 = arith.constant 0.000000e+00 : f32
    %6 = vector.broadcast %cst_5 : f32 to vector<32x64xf32>
    %7 = arith.cmpf ogt, %5, %6 : vector<32x64xf32>
    %cst_6 = arith.constant 2.000000e-01 : f32
    %8 = vector.broadcast %cst_6 : f32 to vector<32x64xf32>
    %9 = arith.mulf %8, %5 : vector<32x64xf32>
    %10 = arith.select %7, %5, %9 : vector<32x64xi1>, vector<32x64xf32>
    %c0_7 = arith.constant 0 : index
    %c0_8 = arith.constant 0 : index
    %11 = vector.load %arg11[%c0_7, %c0_8] : memref<128x64xf32, #tpu.memory_space<vmem>>, vector<32x64xf32>
    tpu.vector_store %arg11[%c0_7, %c0_8], %10 {strides = array<i32>} : memref<128x64xf32, #tpu.memory_space<vmem>>, vector<32x64xf32>,
    %c64 = arith.constant 64 : index
    %c0_9 = arith.constant 0 : index
    %12 = vector.load %arg1[%c64, %c0_9] : memref<256x32xf32, #tpu.memory_space<vmem>>, vector<64x32xf32>
    %cst_10 = arith.constant dense<0.000000e+00> : vector<32x64xf32>
    %13 = tpu.matmul %0, %12, %cst_10 {dimension_numbers = #tpu.dot_dimension_numbers<[1], [1], [0], [0], [0, 0, 1, 0], [], []>} : vector<32x32xf32>, vector<64x32xf32>, vector<32x64xf32> -> vector<32x64xf32>
    %14 = vector.broadcast %1 : vector<32x1xf32> to vector<32x64xf32>
    %15 = arith.addf %13, %14 : vector<32x64xf32>
    %cst_11 = arith.constant 0.000000e+00 : f32
    %16 = vector.broadcast %cst_11 : f32 to vector<32x64xf32>
    %17 = arith.cmpf ogt, %15, %16 : vector<32x64xf32>
    %cst_12 = arith.constant 2.000000e-01 : f32
    %18 = vector.broadcast %cst_12 : f32 to vector<32x64xf32>
    %19 = arith.mulf %18, %15 : vector<32x64xf32>
    %20 = arith.select %17, %15, %19 : vector<32x64xi1>, vector<32x64xf32>
    %c32 = arith.constant 32 : index
    %c0_13 = arith.constant 0 : index
    %21 = vector.load %arg11[%c32, %c0_13] : memref<128x64xf32, #tpu.memory_space<vmem>>, vector<32x64xf32>
    tpu.vector_store %arg11[%c32, %c0_13], %20 {strides = array<i32>} : memref<128x64xf32, #tpu.memory_space<vmem>>, vector<32x64xf32>,
    %c128 = arith.constant 128 : index
    %c0_14 = arith.constant 0 : index
    %22 = vector.load %arg1[%c128, %c0_14] : memref<256x32xf32, #tpu.memory_space<vmem>>, vector<64x32xf32>
    %cst_15 = arith.constant dense<0.000000e+00> : vector<32x64xf32>
    %23 = tpu.matmul %0, %22, %cst_15 {dimension_numbers = #tpu.dot_dimension_numbers<[1], [1], [0], [0], [0, 0, 1, 0], [], []>} : vector<32x32xf32>, vector<64x32xf32>, vector<32x64xf32> -> vector<32x64xf32>
    %24 = vector.broadcast %1 : vector<32x1xf32> to vector<32x64xf32>
    %25 = arith.addf %23, %24 : vector<32x64xf32>
    %cst_16 = arith.constant 0.000000e+00 : f32
    %26 = vector.broadcast %cst_16 : f32 to vector<32x64xf32>
    %27 = arith.cmpf ogt, %25, %26 : vector<32x64xf32>
    %cst_17 = arith.constant 2.000000e-01 : f32
    %28 = vector.broadcast %cst_17 : f32 to vector<32x64xf32>
    %29 = arith.mulf %28, %25 : vector<32x64xf32>
    %30 = arith.select %27, %25, %29 : vector<32x64xi1>, vector<32x64xf32>
    %c64_18 = arith.constant 64 : index
    %c0_19 = arith.constant 0 : index
    %31 = vector.load %arg11[%c64_18, %c0_19] : memref<128x64xf32, #tpu.memory_space<vmem>>, vector<32x64xf32>
    tpu.vector_store %arg11[%c64_18, %c0_19], %30 {strides = array<i32>} : memref<128x64xf32, #tpu.memory_space<vmem>>, vector<32x64xf32>,
    %c192 = arith.constant 192 : index
    %c0_20 = arith.constant 0 : index
    %32 = vector.load %arg1[%c192, %c0_20] : memref<256x32xf32, #tpu.memory_space<vmem>>, vector<64x32xf32>
    %cst_21 = arith.constant dense<0.000000e+00> : vector<32x64xf32>
    %33 = tpu.matmul %0, %32, %cst_21 {dimension_numbers = #tpu.dot_dimension_numbers<[1], [1], [0], [0], [0, 0, 1, 0], [], []>} : vector<32x32xf32>, vector<64x32xf32>, vector<32x64xf32> -> vector<32x64xf32>
    %34 = vector.broadcast %1 : vector<32x1xf32> to vector<32x64xf32>
    %35 = arith.addf %33, %34 : vector<32x64xf32>
    %cst_22 = arith.constant 0.000000e+00 : f32
    %36 = vector.broadcast %cst_22 : f32 to vector<32x64xf32>
    %37 = arith.cmpf ogt, %35, %36 : vector<32x64xf32>
    %cst_23 = arith.constant 2.000000e-01 : f32
    %38 = vector.broadcast %cst_23 : f32 to vector<32x64xf32>
    %39 = arith.mulf %38, %35 : vector<32x64xf32>
    %40 = arith.select %37, %35, %39 : vector<32x64xi1>, vector<32x64xf32>
    %c96 = arith.constant 96 : index
    %c0_24 = arith.constant 0 : index
    %41 = vector.load %arg11[%c96, %c0_24] : memref<128x64xf32, #tpu.memory_space<vmem>>, vector<32x64xf32>
    tpu.vector_store %arg11[%c96, %c0_24], %40 {strides = array<i32>} : memref<128x64xf32, #tpu.memory_space<vmem>>, vector<32x64xf32>,
    %c0_25 = arith.constant 0 : index
    %c0_26 = arith.constant 0 : index
    %42 = vector.load %arg4[%c0_25, %c0_26] : memref<128x128xf32, #tpu.memory_space<vmem>>, vector<128x128xf32>
    %c0_27 = arith.constant 0 : index
    %c0_28 = arith.constant 0 : index
    %43 = vector.load %arg11[%c0_27, %c0_28] : memref<128x64xf32, #tpu.memory_space<vmem>>, vector<128x64xf32>
    %cst_29 = arith.constant dense<0.000000e+00> : vector<128x64xf32>
    %44 = tpu.matmul %42, %43, %cst_29 {dimension_numbers = #tpu.dot_dimension_numbers<[1], [0], [0], [1], [0, 0, 1, 1], [], []>} : vector<128x128xf32>, vector<128x64xf32>, vector<128x64xf32> -> vector<128x64xf32>
    %c0_30 = arith.constant 0 : index
    %c0_31 = arith.constant 0 : index
    %45 = vector.load %arg5[%c0_30, %c0_31] : memref<128x1xf32, #tpu.memory_space<vmem>>, vector<128x1xf32>
    %46 = vector.broadcast %45 : vector<128x1xf32> to vector<128x64xf32>
    %47 = arith.addf %44, %46 : vector<128x64xf32>
    %cst_32 = arith.constant 0.000000e+00 : f32
    %48 = vector.broadcast %cst_32 : f32 to vector<128x64xf32>
    %49 = arith.cmpf ogt, %47, %48 : vector<128x64xf32>
    %cst_33 = arith.constant 2.000000e-01 : f32
    %50 = vector.broadcast %cst_33 : f32 to vector<128x64xf32>
    %51 = arith.mulf %50, %47 : vector<128x64xf32>
    %52 = arith.select %49, %47, %51 : vector<128x64xi1>, vector<128x64xf32>
    %c0_34 = arith.constant 0 : index
    %c0_35 = arith.constant 0 : index
    %53 = vector.load %arg6[%c0_34, %c0_35] : memref<128x128xf32, #tpu.memory_space<vmem>>, vector<128x128xf32>
    %cst_36 = arith.constant dense<0.000000e+00> : vector<128x64xf32>
    %54 = tpu.matmul %53, %52, %cst_36 {dimension_numbers = #tpu.dot_dimension_numbers<[1], [0], [0], [1], [0, 0, 1, 1], [], []>} : vector<128x128xf32>, vector<128x64xf32>, vector<128x64xf32> -> vector<128x64xf32>
    %c0_37 = arith.constant 0 : index
    %c0_38 = arith.constant 0 : index
    %55 = vector.load %arg7[%c0_37, %c0_38] : memref<128x1xf32, #tpu.memory_space<vmem>>, vector<128x1xf32>
    %56 = vector.broadcast %55 : vector<128x1xf32> to vector<128x64xf32>
    %57 = arith.addf %54, %56 : vector<128x64xf32>
    %cst_39 = arith.constant 0.000000e+00 : f32
    %58 = vector.broadcast %cst_39 : f32 to vector<128x64xf32>
    %59 = arith.cmpf ogt, %57, %58 : vector<128x64xf32>
    %cst_40 = arith.constant 2.000000e-01 : f32
    %60 = vector.broadcast %cst_40 : f32 to vector<128x64xf32>
    %61 = arith.mulf %60, %57 : vector<128x64xf32>
    %62 = arith.select %59, %57, %61 : vector<128x64xi1>, vector<128x64xf32>
    %c0_41 = arith.constant 0 : index
    %c0_42 = arith.constant 0 : index
    %63 = vector.load %arg8[%c0_41, %c0_42] : memref<4x128xf32, #tpu.memory_space<vmem>>, vector<4x128xf32>
    %cst_43 = arith.constant dense<0.000000e+00> : vector<4x64xf32>
    %64 = tpu.matmul %63, %62, %cst_43 {dimension_numbers = #tpu.dot_dimension_numbers<[1], [0], [0], [1], [0, 0, 1, 1], [], []>} : vector<4x128xf32>, vector<128x64xf32>, vector<4x64xf32> -> vector<4x64xf32>
    %c0_44 = arith.constant 0 : index
    %c0_45 = arith.constant 0 : index
    %65 = vector.load %arg9[%c0_44, %c0_45] : memref<1x1xf32, #tpu.memory_space<vmem>>, vector<1x1xf32>
    %66 = vector.broadcast %65 : vector<1x1xf32> to vector<4x64xf32>
    %67 = arith.addf %64, %66 : vector<4x64xf32>
    %68 = vector.shape_cast %67 : vector<4x64xf32> to vector<1x4x64xf32>
    %c0_46 = arith.constant 0 : index
    %c0_47 = arith.constant 0 : index
    %c0_48 = arith.constant 0 : index
    %69 = vector.load %arg10[%c0_46, %c0_47, %c0_48] : memref<1x4x64xf32, #tpu.memory_space<vmem>>, vector<1x4x64xf32>
    tpu.vector_store %arg10[%c0_46, %c0_47, %c0_48], %68 {strides = array<i32>} : memref<1x4x64xf32, #tpu.memory_space<vmem>>, vector<1x4x64xf32>,
    return
  }
  func.func @transform_0(%arg0: i32) -> (i32, i32) {
    %c0_i32 = arith.constant 0 : i32
    %c0_i32_0 = arith.constant 0 : i32
    return %arg0, %c0_i32 : i32, i32
  }
  func.func @transform_1(%arg0: i32) -> (i32, i32) {
    %c0_i32 = arith.constant 0 : i32
    %c0_i32_0 = arith.constant 0 : i32
    %c0_i32_1 = arith.constant 0 : i32
    return %c0_i32, %c0_i32_0 : i32, i32
  }
  func.func @transform_2(%arg0: i32) -> (i32, i32) {
    %c0_i32 = arith.constant 0 : i32
    %c0_i32_0 = arith.constant 0 : i32
    %c0_i32_1 = arith.constant 0 : i32
    return %c0_i32, %c0_i32_0 : i32, i32
  }
  func.func @transform_3(%arg0: i32) -> (i32, i32) {
    %c0_i32 = arith.constant 0 : i32
    %c0_i32_0 = arith.constant 0 : i32
    %c0_i32_1 = arith.constant 0 : i32
    return %c0_i32, %c0_i32_0 : i32, i32
  }
  func.func @transform_4(%arg0: i32) -> (i32, i32) {
    %c0_i32 = arith.constant 0 : i32
    %c0_i32_0 = arith.constant 0 : i32
    %c0_i32_1 = arith.constant 0 : i32
    return %c0_i32, %c0_i32_0 : i32, i32
  }
  func.func @transform_5(%arg0: i32) -> (i32, i32) {
    %c0_i32 = arith.constant 0 : i32
    %c0_i32_0 = arith.constant 0 : i32
    %c0_i32_1 = arith.constant 0 : i32
    return %c0_i32, %c0_i32_0 : i32, i32
  }
  func.func @transform_6(%arg0: i32) -> (i32, i32) {
    %c0_i32 = arith.constant 0 : i32
    %c0_i32_0 = arith.constant 0 : i32
    %c0_i32_1 = arith.constant 0 : i32
    return %c0_i32, %c0_i32_0 : i32, i32
  }
  func.func @transform_7(%arg0: i32) -> (i32, i32) {
    %c0_i32 = arith.constant 0 : i32
    %c0_i32_0 = arith.constant 0 : i32
    %c0_i32_1 = arith.constant 0 : i32
    return %c0_i32, %c0_i32_0 : i32, i32
  }
  func.func @transform_8(%arg0: i32) -> (i32, i32) {
    %c0_i32 = arith.constant 0 : i32
    %c0_i32_0 = arith.constant 0 : i32
    %c0_i32_1 = arith.constant 0 : i32
    return %c0_i32, %c0_i32_0 : i32, i32
  }
  func.func @transform_9(%arg0: i32) -> (i32, i32, i32) {
    %c0_i32 = arith.constant 0 : i32
    %c0_i32_0 = arith.constant 0 : i32
    %c0_i32_1 = arith.constant 0 : i32
    return %arg0, %c0_i32, %c0_i32_0 : i32, i32, i32
  }
}

</mosaic_0001>

<llo_original>
// kernel: tpu_custom_call.1
$region0: #{tpu_custom_call.1}
  #allocation0 [shape = 'u32[]', space=smem, size = 0x4, offset = 0x4, fixed_abs, tag = 'smem constant byte address 0x4 - core index']
  #allocation1 [shape = 'u32[72,128]{1,0:T(1,128)}', space=vmem, size = 0x9000, scoped, tag = 'internal scratch']
  #allocation2 [shape = 'f32[128,64]{1,0:T(8,128)}', space=vmem, size = 0x10000, scoped, tag = 'scratch operand']
  #allocation3 [shape = 'f32[1,1]{1,0:T(1,128)S(1)}', space=vmem, size = 0x200, scoped, tag = 'scoped memory for tpu_custom_call.1']
  %s0 = inlined_call_operand.vmem [shape: f32[256,32], index: 0, kind: input, shape index: {}]
  %s1 = inlined_call_operand.vmem [shape: f32[32,32], index: 1, kind: input, shape index: {}]
  %s2 = inlined_call_operand.vmem [shape: f32[32,1], index: 2, kind: input, shape index: {}]
  %s3 = inlined_call_operand.vmem [shape: f32[128,128], index: 3, kind: input, shape index: {}]
  %s4 = inlined_call_operand.vmem [shape: f32[128,1], index: 4, kind: input, shape index: {}]
  %s5 = inlined_call_operand.vmem [shape: f32[128,128], index: 5, kind: input, shape index: {}]
  %s6 = inlined_call_operand.vmem [shape: f32[128,1], index: 6, kind: input, shape index: {}]
  %s7 = inlined_call_operand.vmem [shape: f32[4,128], index: 7, kind: input, shape index: {}]
  %s8 = inlined_call_operand.<no memory space> [shape: f32[1,1], index: 8, kind: input, shape index: {}]
  %s9 = inlined_call_operand.hbm [shape: f32[1,4,64], index: 9, kind: output, shape index: {}]
  %s10 = sld [smem:[#allocation0]]
  $region46: #{tpu_custom_call.1} parent=0
    _
  %s12 = ssub.s32 1, %s10
  %s13 = scalar_select 0, %s12, %s10
  %v14 = vstv %s8
  %15 = vst [vmem:[#allocation3] sm:$0x1] %v14
  $region1: #{tpu_custom_call.1} parent=0
    #allocation4 [shape = 'u8[2048]{0}', space=vmem, size = 0x800, scoped, tag = 'output window, operand 0, single buffered']
    #allocation5 [shape = 's32[1]{0}', space=sflag, size = 0x4, scoped, tag = 'scoped memory for tpu_custom_call.1']
    %16 = vsyncpa [#allocation5], 0
    // Predicated region
    $region2: #{tpu_custom_call.1} parent=1 // pred_check
      _
    $region3: #{tpu_custom_call.1} parent=1 // pred_check_branch
      %18 = sbr.rel (0) target = $region5
    $region4: #{tpu_custom_call.1} parent=1 // pred_region
      _
    $region5: #{tpu_custom_call.1} parent=1 // pred_fallthru
      _
    // Predicated region
    $region6: #{tpu_custom_call.1} parent=1 // pred_check
      _
    $region7: #{tpu_custom_call.1} parent=1 // pred_check_branch
      %20 = sbr.rel (0) target = $region9
    $region8: #{tpu_custom_call.1} parent=1 // pred_region
      _
    $region9: #{tpu_custom_call.1} parent=1 // pred_fallthru
      _
    // Predicated region
    $region10: #{tpu_custom_call.1} parent=1 // pred_check
      _
    $region11: #{tpu_custom_call.1} parent=1 // pred_check_branch
      %22 = sbr.rel (0) target = $region13
    $region12: #{tpu_custom_call.1} parent=1 // pred_region
      _
    $region13: #{tpu_custom_call.1} parent=1 // pred_fallthru
      _
    // Predicated region
    $region14: #{tpu_custom_call.1} parent=1 // pred_check
      _
    $region15: #{tpu_custom_call.1} parent=1 // pred_check_branch
      %24 = sbr.rel (0) target = $region17
    $region16: #{tpu_custom_call.1} parent=1 // pred_region
      _
    $region17: #{tpu_custom_call.1} parent=1 // pred_fallthru
      _
    // Predicated region
    $region18: #{tpu_custom_call.1} parent=1 // pred_check
      _
    $region19: #{tpu_custom_call.1} parent=1 // pred_check_branch
      %26 = sbr.rel (0) target = $region21
    $region20: #{tpu_custom_call.1} parent=1 // pred_region
      _
    $region21: #{tpu_custom_call.1} parent=1 // pred_fallthru
      _
    // Predicated region
    $region22: #{tpu_custom_call.1} parent=1 // pred_check
      _
    $region23: #{tpu_custom_call.1} parent=1 // pred_check_branch
      %28 = sbr.rel (0) target = $region25
    $region24: #{tpu_custom_call.1} parent=1 // pred_region
      _
    $region25: #{tpu_custom_call.1} parent=1 // pred_fallthru
      _
    // Predicated region
    $region26: #{tpu_custom_call.1} parent=1 // pred_check
      _
    $region27: #{tpu_custom_call.1} parent=1 // pred_check_branch
      %30 = sbr.rel (0) target = $region29
    $region28: #{tpu_custom_call.1} parent=1 // pred_region
      _
    $region29: #{tpu_custom_call.1} parent=1 // pred_fallthru
      _
    // Predicated region
    $region30: #{tpu_custom_call.1} parent=1 // pred_check
      _
    $region31: #{tpu_custom_call.1} parent=1 // pred_check_branch
      %32 = sbr.rel (0) target = $region33
    $region32: #{tpu_custom_call.1} parent=1 // pred_region
      _
    $region33: #{tpu_custom_call.1} parent=1 // pred_fallthru
      _
    // Predicated region
    $region34: #{tpu_custom_call.1} parent=1 // pred_check
      _
    $region35: #{tpu_custom_call.1} parent=1 // pred_check_branch
      %34 = sbr.rel (0) target = $region37
    $region36: #{tpu_custom_call.1} parent=1 // pred_region
      _
    $region37: #{tpu_custom_call.1} parent=1 // pred_fallthru
      _
    %v35 = vld [vmem:[%s1] sm:$0xff]
    %v36 = vld [vmem:[%s1 + $0x8] sm:$0xff]
    %v37 = vld [vmem:[%s1 + $0x10] sm:$0xff]
    %v38 = vld [vmem:[%s1 + $0x18] sm:$0xff]
    %v39 = vld [vmem:[%s2] sm:$0xff]
    %v40 = vld [vmem:[%s2 + $0x8] sm:$0xff]
    %v41 = vld [vmem:[%s2 + $0x10] sm:$0xff]
    %v42 = vld [vmem:[%s2 + $0x18] sm:$0xff]
    %v43 = vld [vmem:[%s0] sm:$0xff]
    %v44 = vld [vmem:[%s0 + $0x8] sm:$0xff]
    %v45 = vld [vmem:[%s0 + $0x10] sm:$0xff]
    %v46 = vld [vmem:[%s0 + $0x18] sm:$0xff]
    %v47 = vld [vmem:[%s0 + $0x20] sm:$0xff]
    %v48 = vld [vmem:[%s0 + $0x28] sm:$0xff]
    %v49 = vld [vmem:[%s0 + $0x30] sm:$0xff]
    %v50 = vld [vmem:[%s0 + $0x38] sm:$0xff]
    %52 = vset.pattern.permute.xlu0 0
    %53 = vperm.xlu0 %52, %v39
    %v54 = vpop.permute.xlu0 %53
    %57 = vset.pattern.permute.xlu0 0
    %58 = vperm.xlu0 %57, %v40
    %v59 = vpop.permute.xlu0 %58
    %62 = vset.pattern.permute.xlu0 0
    %63 = vperm.xlu0 %62, %v41
    %v64 = vpop.permute.xlu0 %63
    %67 = vset.pattern.permute.xlu0 0
    %68 = vperm.xlu0 %67, %v42
    %v69 = vpop.permute.xlu0 %68
    %vm71 = vcmask 261120
    %v73 = vsel %vm71, %v35, 0
    %v76 = vsel %vm71, %v36, 0
    %v79 = vsel %vm71, %v37, 0
    %v82 = vsel %vm71, %v38, 0
    %v85 = vsel %vm71, %v43, 0
    %v88 = vsel %vm71, %v44, 0
    %v91 = vsel %vm71, %v45, 0
    %v94 = vsel %vm71, %v46, 0
    %v97 = vsel %vm71, %v47, 0
    %v100 = vsel %vm71, %v48, 0
    %v103 = vsel %vm71, %v49, 0
    %v106 = vsel %vm71, %v50, 0
    %108 = vmatpush.xpose.msra.mxu0 0.0
    %109 = vmatpush.xpose.msra.mxu0 0.0
    %110 = vmatpush.xpose.msra.mxu0 0.0
    %111 = vmatpush.xpose.msra.mxu0 0.0
    %112 = vmatpush.xpose.msra.mxu0 0.0
    %113 = vmatpush.xpose.msra.mxu0 0.0
    %114 = vmatpush.xpose.msra.mxu0 0.0
    %115 = vmatpush.xpose.msra.mxu0 0.0
    %116 = vmatpush.xpose.msra.mxu0 %v106
    %117 = vmatpush.xpose.msra.mxu0 %v103
    %118 = vmatpush.xpose.msra.mxu0 %v100
    %119 = vmatpush.xpose.msra.mxu0 %v97
    %120 = vmatpush.xpose.msra.mxu0 %v94
    %121 = vmatpush.xpose.msra.mxu0 %v91
    %122 = vmatpush.xpose.msra.mxu0 %v88
    %123 = vmatpush.xpose.msra.mxu0 %v85
    %124 = vmatmul.f32.gmra.mxu0 %v73
    %v125 = vpop.f32.mrf.mxu0
    %v126 = vadd.f32 %v54, %v125
    %127 = vmatmul.f32.gmra.mxu0 %v76
    %v128 = vpop.f32.mrf.mxu0
    %v129 = vadd.f32 %v59, %v128
    %130 = vmatmul.f32.gmra.mxu0 %v79
    %v131 = vpop.f32.mrf.mxu0
    %v132 = vadd.f32 %v64, %v131
    %133 = vmatmul.f32.gmra.mxu0 %v82
    %v134 = vpop.f32.mrf.mxu0
    %v135 = vadd.f32 %v69, %v134
    %136 = vdwg.mxu0
    %vm137 = vcmp.gt.f32.partialorder %v126, 0.0
    %vm138 = vcmp.gt.f32.partialorder %v129, 0.0
    %vm139 = vcmp.gt.f32.partialorder %v132, 0.0
    %vm140 = vcmp.gt.f32.partialorder %v135, 0.0
    %v141 = vmul.f32 %v126, 0.2
    %v142 = vmul.f32 %v129, 0.2
    %v143 = vmul.f32 %v132, 0.2
    %v144 = vmul.f32 %v135, 0.2
    %v145 = vsel %vm137, %v126, %v141
    %v146 = vsel %vm138, %v129, %v142
    %v147 = vsel %vm139, %v132, %v143
    %v148 = vsel %vm140, %v135, %v144
    %vm149 = vcmask 523264
    %150 = vst.msk [vmem:[#allocation2] sm:$0xff] %vm149, %v145
    %151 = vst.msk [vmem:[#allocation2 + $0x8] sm:$0xff] %vm149, %v146
    %152 = vst.msk [vmem:[#allocation2 + $0x10] sm:$0xff] %vm149, %v147
    %153 = vst.msk [vmem:[#allocation2 + $0x18] sm:$0xff] %vm149, %v148
    %v154 = vld [vmem:[%s0 + $0x40] sm:$0xff]
    %v155 = vld [vmem:[%s0 + $0x48] sm:$0xff]
    %v156 = vld [vmem:[%s0 + $0x50] sm:$0xff]
    %v157 = vld [vmem:[%s0 + $0x58] sm:$0xff]
    %v158 = vld [vmem:[%s0 + $0x60] sm:$0xff]
    %v159 = vld [vmem:[%s0 + $0x68] sm:$0xff]
    %v160 = vld [vmem:[%s0 + $0x70] sm:$0xff]
    %v161 = vld [vmem:[%s0 + $0x78] sm:$0xff]
    %v163 = vsel %vm71, %v154, 0
    %v166 = vsel %vm71, %v155, 0
    %v169 = vsel %vm71, %v156, 0
    %v172 = vsel %vm71, %v157, 0
    %v175 = vsel %vm71, %v158, 0
    %v178 = vsel %vm71, %v159, 0
    %v181 = vsel %vm71, %v160, 0
    %v184 = vsel %vm71, %v161, 0
    %186 = vmatpush.xpose.msra.mxu0 0.0
    %187 = vmatpush.xpose.msra.mxu0 0.0
    %188 = vmatpush.xpose.msra.mxu0 0.0
    %189 = vmatpush.xpose.msra.mxu0 0.0
    %190 = vmatpush.xpose.msra.mxu0 0.0
    %191 = vmatpush.xpose.msra.mxu0 0.0
    %192 = vmatpush.xpose.msra.mxu0 0.0
    %193 = vmatpush.xpose.msra.mxu0 0.0
    %194 = vmatpush.xpose.msra.mxu0 %v184
    %195 = vmatpush.xpose.msra.mxu0 %v181
    %196 = vmatpush.xpose.msra.mxu0 %v178
    %197 = vmatpush.xpose.msra.mxu0 %v175
    %198 = vmatpush.xpose.msra.mxu0 %v172
    %199 = vmatpush.xpose.msra.mxu0 %v169
    %200 = vmatpush.xpose.msra.mxu0 %v166
    %201 = vmatpush.xpose.msra.mxu0 %v163
    %202 = vmatmul.f32.gmra.mxu0 %v73
    %v203 = vpop.f32.mrf.mxu0
    %v204 = vadd.f32 %v54, %v203
    %205 = vmatmul.f32.gmra.mxu0 %v76
    %v206 = vpop.f32.mrf.mxu0
    %v207 = vadd.f32 %v59, %v206
    %208 = vmatmul.f32.gmra.mxu0 %v79
    %v209 = vpop.f32.mrf.mxu0
    %v210 = vadd.f32 %v64, %v209
    %211 = vmatmul.f32.gmra.mxu0 %v82
    %v212 = vpop.f32.mrf.mxu0
    %v213 = vadd.f32 %v69, %v212
    %214 = vdwg.mxu0
    %vm215 = vcmp.gt.f32.partialorder %v204, 0.0
    %vm216 = vcmp.gt.f32.partialorder %v207, 0.0
    %vm217 = vcmp.gt.f32.partialorder %v210, 0.0
    %vm218 = vcmp.gt.f32.partialorder %v213, 0.0
    %v219 = vmul.f32 %v204, 0.2
    %v220 = vmul.f32 %v207, 0.2
    %v221 = vmul.f32 %v210, 0.2
    %v222 = vmul.f32 %v213, 0.2
    %v223 = vsel %vm215, %v204, %v219
    %v224 = vsel %vm216, %v207, %v220
    %v225 = vsel %vm217, %v210, %v221
    %v226 = vsel %vm218, %v213, %v222
    %227 = vst.msk [vmem:[#allocation2 + $0x20] sm:$0xff] %vm149, %v223
    %228 = vst.msk [vmem:[#allocation2 + $0x28] sm:$0xff] %vm149, %v224
    %229 = vst.msk [vmem:[#allocation2 + $0x30] sm:$0xff] %vm149, %v225
    %230 = vst.msk [vmem:[#allocation2 + $0x38] sm:$0xff] %vm149, %v226
    %v231 = vld [vmem:[%s0 + $0x80] sm:$0xff]
    %v232 = vld [vmem:[%s0 + $0x88] sm:$0xff]
    %v233 = vld [vmem:[%s0 + $0x90] sm:$0xff]
    %v234 = vld [vmem:[%s0 + $0x98] sm:$0xff]
    %v235 = vld [vmem:[%s0 + $0xa0] sm:$0xff]
    %v236 = vld [vmem:[%s0 + $0xa8] sm:$0xff]
    %v237 = vld [vmem:[%s0 + $0xb0] sm:$0xff]
    %v238 = vld [vmem:[%s0 + $0xb8] sm:$0xff]
    %v240 = vsel %vm71, %v231, 0
    %v243 = vsel %vm71, %v232, 0
    %v246 = vsel %vm71, %v233, 0
    %v249 = vsel %vm71, %v234, 0
    %v252 = vsel %vm71, %v235, 0
    %v255 = vsel %vm71, %v236, 0
    %v258 = vsel %vm71, %v237, 0
    %v261 = vsel %vm71, %v238, 0
    %263 = vmatpush.xpose.msra.mxu0 0.0
    %264 = vmatpush.xpose.msra.mxu0 0.0
    %265 = vmatpush.xpose.msra.mxu0 0.0
    %266 = vmatpush.xpose.msra.mxu0 0.0
    %267 = vmatpush.xpose.msra.mxu0 0.0
    %268 = vmatpush.xpose.msra.mxu0 0.0
    %269 = vmatpush.xpose.msra.mxu0 0.0
    %270 = vmatpush.xpose.msra.mxu0 0.0
    %271 = vmatpush.xpose.msra.mxu0 %v261
    %272 = vmatpush.xpose.msra.mxu0 %v258
    %273 = vmatpush.xpose.msra.mxu0 %v255
    %274 = vmatpush.xpose.msra.mxu0 %v252
    %275 = vmatpush.xpose.msra.mxu0 %v249
    %276 = vmatpush.xpose.msra.mxu0 %v246
    %277 = vmatpush.xpose.msra.mxu0 %v243
    %278 = vmatpush.xpose.msra.mxu0 %v240
    %279 = vmatmul.f32.gmra.mxu0 %v73
    %v280 = vpop.f32.mrf.mxu0
    %v281 = vadd.f32 %v54, %v280
    %282 = vmatmul.f32.gmra.mxu0 %v76
    %v283 = vpop.f32.mrf.mxu0
    %v284 = vadd.f32 %v59, %v283
    %285 = vmatmul.f32.gmra.mxu0 %v79
    %v286 = vpop.f32.mrf.mxu0
    %v287 = vadd.f32 %v64, %v286
    %288 = vmatmul.f32.gmra.mxu0 %v82
    %v289 = vpop.f32.mrf.mxu0
    %v290 = vadd.f32 %v69, %v289
    %291 = vdwg.mxu0
    %vm292 = vcmp.gt.f32.partialorder %v281, 0.0
    %vm293 = vcmp.gt.f32.partialorder %v284, 0.0
    %vm294 = vcmp.gt.f32.partialorder %v287, 0.0
    %vm295 = vcmp.gt.f32.partialorder %v290, 0.0
    %v296 = vmul.f32 %v281, 0.2
    %v297 = vmul.f32 %v284, 0.2
    %v298 = vmul.f32 %v287, 0.2
    %v299 = vmul.f32 %v290, 0.2
    %v300 = vsel %vm292, %v281, %v296
    %v301 = vsel %vm293, %v284, %v297
    %v302 = vsel %vm294, %v287, %v298
    %v303 = vsel %vm295, %v290, %v299
    %304 = vst.msk [vmem:[#allocation2 + $0x40] sm:$0xff] %vm149, %v300
    %305 = vst.msk [vmem:[#allocation2 + $0x48] sm:$0xff] %vm149, %v301
    %306 = vst.msk [vmem:[#allocation2 + $0x50] sm:$0xff] %vm149, %v302
    %307 = vst.msk [vmem:[#allocation2 + $0x58] sm:$0xff] %vm149, %v303
    %v308 = vld [vmem:[%s0 + $0xc0] sm:$0xff]
    %v309 = vld [vmem:[%s0 + $0xc8] sm:$0xff]
    %v310 = vld [vmem:[%s0 + $0xd0] sm:$0xff]
    %v311 = vld [vmem:[%s0 + $0xd8] sm:$0xff]
    %v312 = vld [vmem:[%s0 + $0xe0] sm:$0xff]
    %v313 = vld [vmem:[%s0 + $0xe8] sm:$0xff]
    %v314 = vld [vmem:[%s0 + $0xf0] sm:$0xff]
    %v315 = vld [vmem:[%s0 + $0xf8] sm:$0xff]
    %v317 = vsel %vm71, %v308, 0
    %v320 = vsel %vm71, %v309, 0
    %v323 = vsel %vm71, %v310, 0
    %v326 = vsel %vm71, %v311, 0
    %v329 = vsel %vm71, %v312, 0
    %v332 = vsel %vm71, %v313, 0
    %v335 = vsel %vm71, %v314, 0
    %v338 = vsel %vm71, %v315, 0
    %340 = vmatpush.xpose.msra.mxu0 0.0
    %341 = vmatpush.xpose.msra.mxu0 0.0
    %342 = vmatpush.xpose.msra.mxu0 0.0
    %343 = vmatpush.xpose.msra.mxu0 0.0
    %344 = vmatpush.xpose.msra.mxu0 0.0
    %345 = vmatpush.xpose.msra.mxu0 0.0
    %346 = vmatpush.xpose.msra.mxu0 0.0
    %347 = vmatpush.xpose.msra.mxu0 0.0
    %348 = vmatpush.xpose.msra.mxu0 %v338
    %349 = vmatpush.xpose.msra.mxu0 %v335
    %350 = vmatpush.xpose.msra.mxu0 %v332
    %351 = vmatpush.xpose.msra.mxu0 %v329
    %352 = vmatpush.xpose.msra.mxu0 %v326
    %353 = vmatpush.xpose.msra.mxu0 %v323
    %354 = vmatpush.xpose.msra.mxu0 %v320
    %355 = vmatpush.xpose.msra.mxu0 %v317
    %356 = vmatmul.f32.gmra.mxu0 %v73
    %v357 = vpop.f32.mrf.mxu0
    %v358 = vadd.f32 %v54, %v357
    %359 = vmatmul.f32.gmra.mxu0 %v76
    %v360 = vpop.f32.mrf.mxu0
    %v361 = vadd.f32 %v59, %v360
    %362 = vmatmul.f32.gmra.mxu0 %v79
    %v363 = vpop.f32.mrf.mxu0
    %v364 = vadd.f32 %v64, %v363
    %365 = vmatmul.f32.gmra.mxu0 %v82
    %v366 = vpop.f32.mrf.mxu0
    %v367 = vadd.f32 %v69, %v366
    %368 = vdwg.mxu0
    %vm369 = vcmp.gt.f32.partialorder %v358, 0.0
    %vm370 = vcmp.gt.f32.partialorder %v361, 0.0
    %vm371 = vcmp.gt.f32.partialorder %v364, 0.0
    %vm372 = vcmp.gt.f32.partialorder %v367, 0.0
    %v373 = vmul.f32 %v358, 0.2
    %v374 = vmul.f32 %v361, 0.2
    %v375 = vmul.f32 %v364, 0.2
    %v376 = vmul.f32 %v367, 0.2
    %v377 = vsel %vm369, %v358, %v373
    %v378 = vsel %vm370, %v361, %v374
    %v379 = vsel %vm371, %v364, %v375
    %v380 = vsel %vm372, %v367, %v376
    %381 = vst.msk [vmem:[#allocation2 + $0x60] sm:$0xff] %vm149, %v377
    %382 = vst.msk [vmem:[#allocation2 + $0x68] sm:$0xff] %vm149, %v378
    %383 = vst.msk [vmem:[#allocation2 + $0x70] sm:$0xff] %vm149, %v379
    %384 = vst.msk [vmem:[#allocation2 + $0x78] sm:$0xff] %vm149, %v380
    %v385 = vld [vmem:[%s3] sm:$0xff]
    %v386 = vld [vmem:[%s3 + $0x8] sm:$0xff]
    %v387 = vld [vmem:[%s3 + $0x10] sm:$0xff]
    %v388 = vld [vmem:[%s3 + $0x18] sm:$0xff]
    %v389 = vld [vmem:[%s3 + $0x20] sm:$0xff]
    %v390 = vld [vmem:[%s3 + $0x28] sm:$0xff]
    %v391 = vld [vmem:[%s3 + $0x30] sm:$0xff]
    %v392 = vld [vmem:[%s3 + $0x38] sm:$0xff]
    %v393 = vld [vmem:[%s3 + $0x40] sm:$0xff]
    %v394 = vld [vmem:[%s3 + $0x48] sm:$0xff]
    %v395 = vld [vmem:[%s3 + $0x50] sm:$0xff]
    %v396 = vld [vmem:[%s3 + $0x58] sm:$0xff]
    %v397 = vld [vmem:[%s3 + $0x60] sm:$0xff]
    %v398 = vld [vmem:[%s3 + $0x68] sm:$0xff]
    %v399 = vld [vmem:[%s3 + $0x70] sm:$0xff]
    %v400 = vld [vmem:[%s3 + $0x78] sm:$0xff]
    %v401 = vld [vmem:[#allocation2] sm:$0xff]
    %v402 = vld [vmem:[#allocation2 + $0x8] sm:$0xff]
    %v403 = vld [vmem:[#allocation2 + $0x10] sm:$0xff]
    %v404 = vld [vmem:[#allocation2 + $0x18] sm:$0xff]
    %v405 = vld [vmem:[#allocation2 + $0x20] sm:$0xff]
    %v406 = vld [vmem:[#allocation2 + $0x28] sm:$0xff]
    %v407 = vld [vmem:[#allocation2 + $0x30] sm:$0xff]
    %v408 = vld [vmem:[#allocation2 + $0x38] sm:$0xff]
    %v409 = vld [vmem:[#allocation2 + $0x40] sm:$0xff]
    %v410 = vld [vmem:[#allocation2 + $0x48] sm:$0xff]
    %v411 = vld [vmem:[#allocation2 + $0x50] sm:$0xff]
    %v412 = vld [vmem:[#allocation2 + $0x58] sm:$0xff]
    %v413 = vld [vmem:[#allocation2 + $0x60] sm:$0xff]
    %v414 = vld [vmem:[#allocation2 + $0x68] sm:$0xff]
    %v415 = vld [vmem:[#allocation2 + $0x70] sm:$0xff]
    %v416 = vld [vmem:[#allocation2 + $0x78] sm:$0xff]
    %v417 = vld [vmem:[%s4] sm:$0xff]
    %v418 = vld [vmem:[%s4 + $0x8] sm:$0xff]
    %v419 = vld [vmem:[%s4 + $0x10] sm:$0xff]
    %v420 = vld [vmem:[%s4 + $0x18] sm:$0xff]
    %v421 = vld [vmem:[%s4 + $0x20] sm:$0xff]
    %v422 = vld [vmem:[%s4 + $0x28] sm:$0xff]
    %v423 = vld [vmem:[%s4 + $0x30] sm:$0xff]
    %v424 = vld [vmem:[%s4 + $0x38] sm:$0xff]
    %v425 = vld [vmem:[%s4 + $0x40] sm:$0xff]
    %v426 = vld [vmem:[%s4 + $0x48] sm:$0xff]
    %v427 = vld [vmem:[%s4 + $0x50] sm:$0xff]
    %v428 = vld [vmem:[%s4 + $0x58] sm:$0xff]
    %v429 = vld [vmem:[%s4 + $0x60] sm:$0xff]
    %v430 = vld [vmem:[%s4 + $0x68] sm:$0xff]
    %v431 = vld [vmem:[%s4 + $0x70] sm:$0xff]
    %v432 = vld [vmem:[%s4 + $0x78] sm:$0xff]
    %434 = vset.pattern.permute.xlu0 0
    %435 = vperm.xlu0 %434, %v417
    %v436 = vpop.permute.xlu0 %435
    %439 = vset.pattern.permute.xlu0 0
    %440 = vperm.xlu0 %439, %v418
    %v441 = vpop.permute.xlu0 %440
    %444 = vset.pattern.permute.xlu0 0
    %445 = vperm.xlu0 %444, %v419
    %v446 = vpop.permute.xlu0 %445
    %449 = vset.pattern.permute.xlu0 0
    %450 = vperm.xlu0 %449, %v420
    %v451 = vpop.permute.xlu0 %450
    %454 = vset.pattern.permute.xlu0 0
    %455 = vperm.xlu0 %454, %v421
    %v456 = vpop.permute.xlu0 %455
    %459 = vset.pattern.permute.xlu0 0
    %460 = vperm.xlu0 %459, %v422
    %v461 = vpop.permute.xlu0 %460
    %464 = vset.pattern.permute.xlu0 0
    %465 = vperm.xlu0 %464, %v423
    %v466 = vpop.permute.xlu0 %465
    %469 = vset.pattern.permute.xlu0 0
    %470 = vperm.xlu0 %469, %v424
    %v471 = vpop.permute.xlu0 %470
    %474 = vset.pattern.permute.xlu0 0
    %475 = vperm.xlu0 %474, %v425
    %v476 = vpop.permute.xlu0 %475
    %479 = vset.pattern.permute.xlu0 0
    %480 = vperm.xlu0 %479, %v426
    %v481 = vpop.permute.xlu0 %480
    %484 = vset.pattern.permute.xlu0 0
    %485 = vperm.xlu0 %484, %v427
    %v486 = vpop.permute.xlu0 %485
    %489 = vset.pattern.permute.xlu0 0
    %490 = vperm.xlu0 %489, %v428
    %v491 = vpop.permute.xlu0 %490
    %494 = vset.pattern.permute.xlu0 0
    %495 = vperm.xlu0 %494, %v429
    %v496 = vpop.permute.xlu0 %495
    %499 = vset.pattern.permute.xlu0 0
    %500 = vperm.xlu0 %499, %v430
    %v501 = vpop.permute.xlu0 %500
    %504 = vset.pattern.permute.xlu0 0
    %505 = vperm.xlu0 %504, %v431
    %v506 = vpop.permute.xlu0 %505
    %509 = vset.pattern.permute.xlu0 0
    %510 = vperm.xlu0 %509, %v432
    %v511 = vpop.permute.xlu0 %510
    %513 = vmatpush.msra.mxu0 %v416
    %514 = vmatpush.msra.mxu0 %v415
    %515 = vmatpush.msra.mxu0 %v414
    %516 = vmatpush.msra.mxu0 %v413
    %517 = vmatpush.msra.mxu0 %v412
    %518 = vmatpush.msra.mxu0 %v411
    %519 = vmatpush.msra.mxu0 %v410
    %520 = vmatpush.msra.mxu0 %v409
    %521 = vmatpush.msra.mxu0 %v408
    %522 = vmatpush.msra.mxu0 %v407
    %523 = vmatpush.msra.mxu0 %v406
    %524 = vmatpush.msra.mxu0 %v405
    %525 = vmatpush.msra.mxu0 %v404
    %526 = vmatpush.msra.mxu0 %v403
    %527 = vmatpush.msra.mxu0 %v402
    %528 = vmatpush.msra.mxu0 %v401
    %529 = vmatmul.f32.gmra.mxu0 %v385
    %v530 = vpop.f32.mrf.mxu0
    %v531 = vadd.f32 %v436, %v530
    %532 = vmatmul.f32.gmra.mxu0 %v386
    %v533 = vpop.f32.mrf.mxu0
    %v534 = vadd.f32 %v441, %v533
    %535 = vmatmul.f32.gmra.mxu0 %v387
    %v536 = vpop.f32.mrf.mxu0
    %v537 = vadd.f32 %v446, %v536
    %538 = vmatmul.f32.gmra.mxu0 %v388
    %v539 = vpop.f32.mrf.mxu0
    %v540 = vadd.f32 %v451, %v539
    %541 = vmatmul.f32.gmra.mxu0 %v389
    %v542 = vpop.f32.mrf.mxu0
    %v543 = vadd.f32 %v456, %v542
    %544 = vmatmul.f32.gmra.mxu0 %v390
    %v545 = vpop.f32.mrf.mxu0
    %v546 = vadd.f32 %v461, %v545
    %547 = vmatmul.f32.gmra.mxu0 %v391
    %v548 = vpop.f32.mrf.mxu0
    %v549 = vadd.f32 %v466, %v548
    %550 = vmatmul.f32.gmra.mxu0 %v392
    %v551 = vpop.f32.mrf.mxu0
    %v552 = vadd.f32 %v471, %v551
    %553 = vmatmul.f32.gmra.mxu0 %v393
    %v554 = vpop.f32.mrf.mxu0
    %v555 = vadd.f32 %v476, %v554
    %556 = vmatmul.f32.gmra.mxu0 %v394
    %v557 = vpop.f32.mrf.mxu0
    %v558 = vadd.f32 %v481, %v557
    %559 = vmatmul.f32.gmra.mxu0 %v395
    %v560 = vpop.f32.mrf.mxu0
    %v561 = vadd.f32 %v486, %v560
    %562 = vmatmul.f32.gmra.mxu0 %v396
    %v563 = vpop.f32.mrf.mxu0
    %v564 = vadd.f32 %v491, %v563
    %565 = vmatmul.f32.gmra.mxu0 %v397
    %v566 = vpop.f32.mrf.mxu0
    %v567 = vadd.f32 %v496, %v566
    %568 = vmatmul.f32.gmra.mxu0 %v398
    %v569 = vpop.f32.mrf.mxu0
    %v570 = vadd.f32 %v501, %v569
    %571 = vmatmul.f32.gmra.mxu0 %v399
    %v572 = vpop.f32.mrf.mxu0
    %v573 = vadd.f32 %v506, %v572
    %574 = vmatmul.f32.gmra.mxu0 %v400
    %v575 = vpop.f32.mrf.mxu0
    %v576 = vadd.f32 %v511, %v575
    %577 = vdwg.mxu0
    %vm578 = vcmp.gt.f32.partialorder %v531, 0.0
    %vm579 = vcmp.gt.f32.partialorder %v534, 0.0
    %vm580 = vcmp.gt.f32.partialorder %v537, 0.0
    %vm581 = vcmp.gt.f32.partialorder %v540, 0.0
    %vm582 = vcmp.gt.f32.partialorder %v543, 0.0
    %vm583 = vcmp.gt.f32.partialorder %v546, 0.0
    %vm584 = vcmp.gt.f32.partialorder %v549, 0.0
    %vm585 = vcmp.gt.f32.partialorder %v552, 0.0
    %vm586 = vcmp.gt.f32.partialorder %v555, 0.0
    %vm587 = vcmp.gt.f32.partialorder %v558, 0.0
    %vm588 = vcmp.gt.f32.partialorder %v561, 0.0
    %vm589 = vcmp.gt.f32.partialorder %v564, 0.0
    %vm590 = vcmp.gt.f32.partialorder %v567, 0.0
    %vm591 = vcmp.gt.f32.partialorder %v570, 0.0
    %vm592 = vcmp.gt.f32.partialorder %v573, 0.0
    %vm593 = vcmp.gt.f32.partialorder %v576, 0.0
    %v594 = vmul.f32 %v531, 0.2
    %v595 = vmul.f32 %v534, 0.2
    %v596 = vmul.f32 %v537, 0.2
    %v597 = vmul.f32 %v540, 0.2
    %v598 = vmul.f32 %v543, 0.2
    %v599 = vmul.f32 %v546, 0.2
    %v600 = vmul.f32 %v549, 0.2
    %v601 = vmul.f32 %v552, 0.2
    %v602 = vmul.f32 %v555, 0.2
    %v603 = vmul.f32 %v558, 0.2
    %v604 = vmul.f32 %v561, 0.2
    %v605 = vmul.f32 %v564, 0.2
    %v606 = vmul.f32 %v567, 0.2
    %v607 = vmul.f32 %v570, 0.2
    %v608 = vmul.f32 %v573, 0.2
    %v609 = vmul.f32 %v576, 0.2
    %v610 = vsel %vm578, %v531, %v594
    %v611 = vsel %vm579, %v534, %v595
    %v612 = vsel %vm580, %v537, %v596
    %v613 = vsel %vm581, %v540, %v597
    %v614 = vsel %vm582, %v543, %v598
    %v615 = vsel %vm583, %v546, %v599
    %v616 = vsel %vm584, %v549, %v600
    %v617 = vsel %vm585, %v552, %v601
    %v618 = vsel %vm586, %v555, %v602
    %v619 = vsel %vm587, %v558, %v603
    %v620 = vsel %vm588, %v561, %v604
    %v621 = vsel %vm589, %v564, %v605
    %v622 = vsel %vm590, %v567, %v606
    %v623 = vsel %vm591, %v570, %v607
    %v624 = vsel %vm592, %v573, %v608
    %v625 = vsel %vm593, %v576, %v609
    %v626 = vld [vmem:[%s5] sm:$0xff]
    %v627 = vld [vmem:[%s5 + $0x8] sm:$0xff]
    %v628 = vld [vmem:[%s5 + $0x10] sm:$0xff]
    %v629 = vld [vmem:[%s5 + $0x18] sm:$0xff]
    %v630 = vld [vmem:[%s5 + $0x20] sm:$0xff]
    %v631 = vld [vmem:[%s5 + $0x28] sm:$0xff]
    %v632 = vld [vmem:[%s5 + $0x30] sm:$0xff]
    %v633 = vld [vmem:[%s5 + $0x38] sm:$0xff]
    %v634 = vld [vmem:[%s5 + $0x40] sm:$0xff]
    %v635 = vld [vmem:[%s5 + $0x48] sm:$0xff]
    %v636 = vld [vmem:[%s5 + $0x50] sm:$0xff]
    %v637 = vld [vmem:[%s5 + $0x58] sm:$0xff]
    %v638 = vld [vmem:[%s5 + $0x60] sm:$0xff]
    %v639 = vld [vmem:[%s5 + $0x68] sm:$0xff]
    %v640 = vld [vmem:[%s5 + $0x70] sm:$0xff]
    %v641 = vld [vmem:[%s5 + $0x78] sm:$0xff]
    %v642 = vld [vmem:[%s6] sm:$0xff]
    %v643 = vld [vmem:[%s6 + $0x8] sm:$0xff]
    %v644 = vld [vmem:[%s6 + $0x10] sm:$0xff]
    %v645 = vld [vmem:[%s6 + $0x18] sm:$0xff]
    %v646 = vld [vmem:[%s6 + $0x20] sm:$0xff]
    %v647 = vld [vmem:[%s6 + $0x28] sm:$0xff]
    %v648 = vld [vmem:[%s6 + $0x30] sm:$0xff]
    %v649 = vld [vmem:[%s6 + $0x38] sm:$0xff]
    %v650 = vld [vmem:[%s6 + $0x40] sm:$0xff]
    %v651 = vld [vmem:[%s6 + $0x48] sm:$0xff]
    %v652 = vld [vmem:[%s6 + $0x50] sm:$0xff]
    %v653 = vld [vmem:[%s6 + $0x58] sm:$0xff]
    %v654 = vld [vmem:[%s6 + $0x60] sm:$0xff]
    %v655 = vld [vmem:[%s6 + $0x68] sm:$0xff]
    %v656 = vld [vmem:[%s6 + $0x70] sm:$0xff]
    %v657 = vld [vmem:[%s6 + $0x78] sm:$0xff]
    %659 = vset.pattern.permute.xlu0 0
    %660 = vperm.xlu0 %659, %v642
    %v661 = vpop.permute.xlu0 %660
    %664 = vset.pattern.permute.xlu0 0
    %665 = vperm.xlu0 %664, %v643
    %v666 = vpop.permute.xlu0 %665
    %669 = vset.pattern.permute.xlu0 0
    %670 = vperm.xlu0 %669, %v644
    %v671 = vpop.permute.xlu0 %670
    %674 = vset.pattern.permute.xlu0 0
    %675 = vperm.xlu0 %674, %v645
    %v676 = vpop.permute.xlu0 %675
    %679 = vset.pattern.permute.xlu0 0
    %680 = vperm.xlu0 %679, %v646
    %v681 = vpop.permute.xlu0 %680
    %684 = vset.pattern.permute.xlu0 0
    %685 = vperm.xlu0 %684, %v647
    %v686 = vpop.permute.xlu0 %685
    %689 = vset.pattern.permute.xlu0 0
    %690 = vperm.xlu0 %689, %v648
    %v691 = vpop.permute.xlu0 %690
    %694 = vset.pattern.permute.xlu0 0
    %695 = vperm.xlu0 %694, %v649
    %v696 = vpop.permute.xlu0 %695
    %699 = vset.pattern.permute.xlu0 0
    %700 = vperm.xlu0 %699, %v650
    %v701 = vpop.permute.xlu0 %700
    %704 = vset.pattern.permute.xlu0 0
    %705 = vperm.xlu0 %704, %v651
    %v706 = vpop.permute.xlu0 %705
    %709 = vset.pattern.permute.xlu0 0
    %710 = vperm.xlu0 %709, %v652
    %v711 = vpop.permute.xlu0 %710
    %714 = vset.pattern.permute.xlu0 0
    %715 = vperm.xlu0 %714, %v653
    %v716 = vpop.permute.xlu0 %715
    %719 = vset.pattern.permute.xlu0 0
    %720 = vperm.xlu0 %719, %v654
    %v721 = vpop.permute.xlu0 %720
    %724 = vset.pattern.permute.xlu0 0
    %725 = vperm.xlu0 %724, %v655
    %v726 = vpop.permute.xlu0 %725
    %729 = vset.pattern.permute.xlu0 0
    %730 = vperm.xlu0 %729, %v656
    %v731 = vpop.permute.xlu0 %730
    %734 = vset.pattern.permute.xlu0 0
    %735 = vperm.xlu0 %734, %v657
    %v736 = vpop.permute.xlu0 %735
    %738 = vmatpush.msra.mxu0 %v625
    %739 = vmatpush.msra.mxu0 %v624
    %740 = vmatpush.msra.mxu0 %v623
    %741 = vmatpush.msra.mxu0 %v622
    %742 = vmatpush.msra.mxu0 %v621
    %743 = vmatpush.msra.mxu0 %v620
    %744 = vmatpush.msra.mxu0 %v619
    %745 = vmatpush.msra.mxu0 %v618
    %746 = vmatpush.msra.mxu0 %v617
    %747 = vmatpush.msra.mxu0 %v616
    %748 = vmatpush.msra.mxu0 %v615
    %749 = vmatpush.msra.mxu0 %v614
    %750 = vmatpush.msra.mxu0 %v613
    %751 = vmatpush.msra.mxu0 %v612
    %752 = vmatpush.msra.mxu0 %v611
    %753 = vmatpush.msra.mxu0 %v610
    %754 = vmatmul.f32.gmra.mxu0 %v626
    %v755 = vpop.f32.mrf.mxu0
    %v756 = vadd.f32 %v661, %v755
    %757 = vmatmul.f32.gmra.mxu0 %v627
    %v758 = vpop.f32.mrf.mxu0
    %v759 = vadd.f32 %v666, %v758
    %760 = vmatmul.f32.gmra.mxu0 %v628
    %v761 = vpop.f32.mrf.mxu0
    %v762 = vadd.f32 %v671, %v761
    %763 = vmatmul.f32.gmra.mxu0 %v629
    %v764 = vpop.f32.mrf.mxu0
    %v765 = vadd.f32 %v676, %v764
    %766 = vmatmul.f32.gmra.mxu0 %v630
    %v767 = vpop.f32.mrf.mxu0
    %v768 = vadd.f32 %v681, %v767
    %769 = vmatmul.f32.gmra.mxu0 %v631
    %v770 = vpop.f32.mrf.mxu0
    %v771 = vadd.f32 %v686, %v770
    %772 = vmatmul.f32.gmra.mxu0 %v632
    %v773 = vpop.f32.mrf.mxu0
    %v774 = vadd.f32 %v691, %v773
    %775 = vmatmul.f32.gmra.mxu0 %v633
    %v776 = vpop.f32.mrf.mxu0
    %v777 = vadd.f32 %v696, %v776
    %778 = vmatmul.f32.gmra.mxu0 %v634
    %v779 = vpop.f32.mrf.mxu0
    %v780 = vadd.f32 %v701, %v779
    %781 = vmatmul.f32.gmra.mxu0 %v635
    %v782 = vpop.f32.mrf.mxu0
    %v783 = vadd.f32 %v706, %v782
    %784 = vmatmul.f32.gmra.mxu0 %v636
    %v785 = vpop.f32.mrf.mxu0
    %v786 = vadd.f32 %v711, %v785
    %787 = vmatmul.f32.gmra.mxu0 %v637
    %v788 = vpop.f32.mrf.mxu0
    %v789 = vadd.f32 %v716, %v788
    %790 = vmatmul.f32.gmra.mxu0 %v638
    %v791 = vpop.f32.mrf.mxu0
    %v792 = vadd.f32 %v721, %v791
    %793 = vmatmul.f32.gmra.mxu0 %v639
    %v794 = vpop.f32.mrf.mxu0
    %v795 = vadd.f32 %v726, %v794
    %796 = vmatmul.f32.gmra.mxu0 %v640
    %v797 = vpop.f32.mrf.mxu0
    %v798 = vadd.f32 %v731, %v797
    %799 = vmatmul.f32.gmra.mxu0 %v641
    %v800 = vpop.f32.mrf.mxu0
    %v801 = vadd.f32 %v736, %v800
    %802 = vdwg.mxu0
    %vm803 = vcmp.gt.f32.partialorder %v756, 0.0
    %vm804 = vcmp.gt.f32.partialorder %v759, 0.0
    %vm805 = vcmp.gt.f32.partialorder %v762, 0.0
    %vm806 = vcmp.gt.f32.partialorder %v765, 0.0
    %vm807 = vcmp.gt.f32.partialorder %v768, 0.0
    %vm808 = vcmp.gt.f32.partialorder %v771, 0.0
    %vm809 = vcmp.gt.f32.partialorder %v774, 0.0
    %vm810 = vcmp.gt.f32.partialorder %v777, 0.0
    %vm811 = vcmp.gt.f32.partialorder %v780, 0.0
    %vm812 = vcmp.gt.f32.partialorder %v783, 0.0
    %vm813 = vcmp.gt.f32.partialorder %v786, 0.0
    %vm814 = vcmp.gt.f32.partialorder %v789, 0.0
    %vm815 = vcmp.gt.f32.partialorder %v792, 0.0
    %vm816 = vcmp.gt.f32.partialorder %v795, 0.0
    %vm817 = vcmp.gt.f32.partialorder %v798, 0.0
    %vm818 = vcmp.gt.f32.partialorder %v801, 0.0
    %v819 = vmul.f32 %v756, 0.2
    %v820 = vmul.f32 %v759, 0.2
    %v821 = vmul.f32 %v762, 0.2
    %v822 = vmul.f32 %v765, 0.2
    %v823 = vmul.f32 %v768, 0.2
    %v824 = vmul.f32 %v771, 0.2
    %v825 = vmul.f32 %v774, 0.2
    %v826 = vmul.f32 %v777, 0.2
    %v827 = vmul.f32 %v780, 0.2
    %v828 = vmul.f32 %v783, 0.2
    %v829 = vmul.f32 %v786, 0.2
    %v830 = vmul.f32 %v789, 0.2
    %v831 = vmul.f32 %v792, 0.2
    %v832 = vmul.f32 %v795, 0.2
    %v833 = vmul.f32 %v798, 0.2
    %v834 = vmul.f32 %v801, 0.2
    %v835 = vsel %vm803, %v756, %v819
    %v836 = vsel %vm804, %v759, %v820
    %v837 = vsel %vm805, %v762, %v821
    %v838 = vsel %vm806, %v765, %v822
    %v839 = vsel %vm807, %v768, %v823
    %v840 = vsel %vm808, %v771, %v824
    %v841 = vsel %vm809, %v774, %v825
    %v842 = vsel %vm810, %v777, %v826
    %v843 = vsel %vm811, %v780, %v827
    %v844 = vsel %vm812, %v783, %v828
    %v845 = vsel %vm813, %v786, %v829
    %v846 = vsel %vm814, %v789, %v830
    %v847 = vsel %vm815, %v792, %v831
    %v848 = vsel %vm816, %v795, %v832
    %v849 = vsel %vm817, %v798, %v833
    %v850 = vsel %vm818, %v801, %v834
    %v851 = vld [vmem:[%s7] sm:$0xf]
    %v852 = vld [vmem:[#allocation3] sm:$0x1]
    %v854 = vperm.slane %v852, 0
    %855 = vset.pattern.permute.xlu0 0
    %856 = vperm.xlu0 %855, %v854
    %v857 = vpop.permute.xlu0 %856
    %859 = vmatpush.msra.mxu0 %v850
    %860 = vmatpush.msra.mxu0 %v849
    %861 = vmatpush.msra.mxu0 %v848
    %862 = vmatpush.msra.mxu0 %v847
    %863 = vmatpush.msra.mxu0 %v846
    %864 = vmatpush.msra.mxu0 %v845
    %865 = vmatpush.msra.mxu0 %v844
    %866 = vmatpush.msra.mxu0 %v843
    %867 = vmatpush.msra.mxu0 %v842
    %868 = vmatpush.msra.mxu0 %v841
    %869 = vmatpush.msra.mxu0 %v840
    %870 = vmatpush.msra.mxu0 %v839
    %871 = vmatpush.msra.mxu0 %v838
    %872 = vmatpush.msra.mxu0 %v837
    %873 = vmatpush.msra.mxu0 %v836
    %874 = vmatpush.msra.mxu0 %v835
    %875 = vmatmul.f32.gmra.mxu0 %v851
    %v876 = vpop.f32.mrf.mxu0
    %v877 = vadd.f32 %v857, %v876
    %878 = vdwg.mxu0
    %vm879 = vcmask 519168
    %880 = vst.msk [vmem:[#allocation4] sm:$0xf] %vm879, %v877
    // Predicated region
    $region38: #{tpu_custom_call.1} parent=1 // pred_check
      _
    $region39: #{tpu_custom_call.1} parent=1 // pred_check_branch
      %882 = sbr.rel (0) target = $region41
    $region40: #{tpu_custom_call.1} parent=1 // pred_region
      %884 = vsyncadd [#allocation5], 0
      %s886 = sshll.u32 [#allocation4], 4
      %s887 = int_to_ptr.vmem [resolvable:$true] %s886
      %s888 = sshll.u32 %s9, 4
      %s889 = int_to_ptr.hbm [resolvable:$true] %s888
      %891 = dma.vmem_to_hbm [thread:$0]  %s887, 64, %s889, [#allocation5]
    $region41: #{tpu_custom_call.1} parent=1 // pred_fallthru
      _
    // Predicated region
    $region42: #{tpu_custom_call.1} parent=1 // pred_check
      _
    $region43: #{tpu_custom_call.1} parent=1 // pred_check_branch
      %893 = sbr.rel (0) target = $region45
    $region44: #{tpu_custom_call.1} parent=1 // pred_region
      %895 = dma.done [#allocation5], 64
    $region45: #{tpu_custom_call.1} parent=1 // pred_fallthru
      _
    %896 = vsyncpa [#allocation5], 1

</llo_original>
